<compile_context>
chip_gen: v5e
topology: v5e:2x2
jax: 0.10.0
libtpu: 0.0.40
codegen_flags: <defaults>
</compile_context>

<pallas_src>
import jax
import jax.numpy as jnp
from jax.experimental import pallas as pl
from jax.experimental.pallas import tpu as pltpu

LN_EPS = 1e-5


def _round_up(x, m):
    return (x + m - 1) // m * m


def _linear_ln_kernel(xt_ref, w_ref, params_ref, o_ref):
    # xt_ref:     (IN, tm)   activations, feature-major (tokens on lane axis)
    # w_ref:      (OUT, IN)  pre-centered linear weight (torch layout)
    # params_ref: (OUT, 2)   column 0 = gamma, column 1 = beta
    # o_ref:      (OUT, tm)  lane-dense output (tokens on lane axis)
    xt = xt_ref[...].astype(jnp.float32)
    w = w_ref[...].astype(jnp.float32)

    # (OUT, IN) @ (IN, tm) -> (OUT, tm).  Plain (M,K)x(K,N) contraction:
    # K (=IN) is the last dim of the LHS and the sublane dim of the RHS,
    # tokens land on lanes -> native MXU feed, no per-step transposes,
    # output already lane-dense.
    y = jax.lax.dot_general(
        w, xt,
        dimension_numbers=(((1,), (0,)), ((), ())),
        preferred_element_type=jnp.float32,
    )

    # LayerNorm across the OUT (sublane) axis.  The row mean is zero by
    # construction (weight centered over OUT at prep time), so only the
    # biased-variance reduce remains (matches torch).
    out_features = y.shape[0]
    var = jnp.sum(y * y, axis=0, keepdims=True) * (1.0 / out_features)
    inv = jax.lax.rsqrt(var + LN_EPS)           # EUP rsqrt, f32 (v5e-safe)

    p = params_ref[...].astype(jnp.float32)
    gamma = p[:, 0:1]                            # (OUT, 1), broadcast over lanes
    beta = p[:, 1:2]

    o_ref[...] = (y * inv * gamma + beta).astype(o_ref.dtype)


def prepare_linear_ln_params(w, gamma, beta):
    """One-time (model-load) parameter prep.

    * Folds the LayerNorm mean-subtraction into the Linear weight:
      w_c = w - mean_over_OUT(w) makes every row of x @ w_c.T zero-mean.
      Only valid because the Linear has bias=False; a bias would need the
      same centering.
    * Packs gamma/beta into a single (OUT, 2) array.
    """
    w_centered = w - jnp.mean(w, axis=0, keepdims=True)
    ln_params = jnp.stack(
        [gamma.astype(jnp.float32), beta.astype(jnp.float32)], axis=-1
    )
    return w_centered, ln_params


def linear_layernorm(x, w_centered, ln_params, *, tm_max=512):
    """x: (B, S, IN); w_centered: (OUT, IN) pre-centered; ln_params: (OUT, 2)."""
    B, S, IN = x.shape
    OUT = w_centered.shape[0]
    M = B * S

    # Tile size over the token axis.  For large M use tm_max (multiple of
    # 128 -> valid lane-dim block); for small M use a single full-size block.
    if M > tm_max:
        tm = tm_max
        M_pad = _round_up(M, tm)
    else:
        tm = _round_up(M, 8)
        M_pad = tm

    # Feature-major activations so tokens sit on the lane axis inside the
    # kernel (layout plumbing; zero-padded tokens come out as `beta` and are
    # sliced away below).
    x_t = x.reshape(M, IN).T                     # (IN, M)
    if M_pad != M:
        x_t = jnp.pad(x_t, ((0, 0), (0, M_pad - M)))

    grid = (M_pad // tm,)

    out_t = pl.pallas_call(
        _linear_ln_kernel,
        out_shape=jax.ShapeDtypeStruct((OUT, M_pad), x.dtype),
        grid=grid,
        in_specs=[
            pl.BlockSpec((IN, tm), lambda i: (0, i)),    # per-step x tile
            pl.BlockSpec((OUT, IN), lambda i: (0, 0)),   # weight: VMEM-resident
            pl.BlockSpec((OUT, 2), lambda i: (0, 0)),    # gamma/beta: resident
        ],
        out_specs=pl.BlockSpec((OUT, tm), lambda i: (0, i)),
        compiler_params=pltpu.CompilerParams(
            dimension_semantics=("parallel",),           # shards M over v7x's 2 TCs
        ),
    )(x_t, w_centered, ln_params)

    return out_t[:, :M].T.reshape(B, S, OUT)


if __name__ == "__main__":
    key = jax.random.PRNGKey(0)
    k_x, k_w, k_xb, k_g, k_b = jax.random.split(key, 5)

    IN, OUT = 100, 10

    # Linear(100, 10, bias=False) weight: (OUT, IN), U(-1/sqrt(IN), 1/sqrt(IN)).
    bound = 1.0 / jnp.sqrt(jnp.float32(IN))
    w = jax.random.uniform(k_w, (OUT, IN), dtype=jnp.float32,
                           minval=-bound, maxval=bound)

    def reference(x, gamma, beta):
        y = x @ w.T
        mu = jnp.mean(y, axis=-1, keepdims=True)
        var = jnp.mean((y - mu) ** 2, axis=-1, keepdims=True)
        return (y - mu) * jax.lax.rsqrt(var + LN_EPS) * gamma + beta

    # --- 1) Spec shape (1, 10, 100) with torch-default LN params (1, 0). ---
    gamma = jnp.ones((OUT,), dtype=jnp.float32)
    beta = jnp.zeros((OUT,), dtype=jnp.float32)
    w_c, ln_p = prepare_linear_ln_params(w, gamma, beta)

    x = jax.random.uniform(k_x, (1, 10, IN), dtype=jnp.float32)
    out = jax.block_until_ready(linear_layernorm(x, w_c, ln_p))
    assert out.shape == (1, 10, OUT)
    assert jnp.allclose(out, reference(x, gamma, beta), atol=1e-4, rtol=1e-4)

    # --- 2) Batched shape exercising the M grid + padding path:
    #        M = 1000 -> M_pad = 1024, two grid steps, resident weight. -----
    gamma_b = jax.random.uniform(k_g, (OUT,), dtype=jnp.float32,
                                 minval=0.5, maxval=1.5)
    beta_b = jax.random.uniform(k_b, (OUT,), dtype=jnp.float32,
                                minval=-0.5, maxval=0.5)
    w_c2, ln_p2 = prepare_linear_ln_params(w, gamma_b, beta_b)

    xb = jax.random.uniform(k_xb, (2, 500, IN), dtype=jnp.float32)
    outb = jax.block_until_ready(linear_layernorm(xb, w_c2, ln_p2))
    assert outb.shape == (2, 500, OUT)
    assert jnp.allclose(outb, reference(xb, gamma_b, beta_b),
                        atol=1e-4, rtol=1e-4)

    print("KERNEL_OK")
</pallas_src>

<mosaic_0001>
module attributes {stable_mosaic.version = 11 : i64} {
  func.func @_linear_ln_kernel(%arg0: i32, %arg1: memref<100x16xf32, #tpu.memory_space<vmem>>, %arg2: memref<10x100xf32, #tpu.memory_space<vmem>>, %arg3: memref<10x2xf32, #tpu.memory_space<vmem>>, %arg4: memref<10x16xf32, #tpu.memory_space<vmem>>) attributes {dimension_semantics = [#tpu.dimension_semantics<parallel>], iteration_bounds = array<i64: 1>, scalar_prefetch = 0 : i64, scratch_operands = 0 : i64, tpu.core_type = #tpu.core_type<tc>, window_params = [{transform_indices = @transform_0, window_bounds = array<i64: 100, 16>}, {pipeline_mode = #tpu.pipeline_mode<synchronous>, transform_indices = @transform_1, window_bounds = array<i64: 10, 100>}, {pipeline_mode = #tpu.pipeline_mode<synchronous>, transform_indices = @transform_2, window_bounds = array<i64: 10, 2>}, {transform_indices = @transform_3, window_bounds = array<i64: 10, 16>}]} {
    %c0 = arith.constant 0 : index
    %c0_0 = arith.constant 0 : index
    %0 = vector.load %arg1[%c0, %c0_0] : memref<100x16xf32, #tpu.memory_space<vmem>>, vector<100x16xf32>
    %c0_1 = arith.constant 0 : index
    %c0_2 = arith.constant 0 : index
    %1 = vector.load %arg2[%c0_1, %c0_2] : memref<10x100xf32, #tpu.memory_space<vmem>>, vector<10x100xf32>
    %cst = arith.constant dense<0.000000e+00> : vector<10x16xf32>
    %2 = tpu.matmul %1, %0, %cst {dimension_numbers = #tpu.dot_dimension_numbers<[1], [0], [0], [1], [0, 0, 1, 1], [], []>} : vector<10x100xf32>, vector<100x16xf32>, vector<10x16xf32> -> vector<10x16xf32>
    %3 = arith.mulf %2, %2 : vector<10x16xf32>
    %cst_3 = arith.constant dense<0.000000e+00> : vector<16xf32>
    %4 = vector.multi_reduction <add>, %3, %cst_3 [0] : vector<10x16xf32> to vector<16xf32>
    %5 = vector.shape_cast %4 : vector<16xf32> to vector<1x16xf32>
    %cst_4 = arith.constant 1.000000e-01 : f32
    %6 = vector.broadcast %cst_4 : f32 to vector<1x16xf32>
    %7 = arith.mulf %5, %6 : vector<1x16xf32>
    %cst_5 = arith.constant 9.99999974E-6 : f32
    %8 = vector.broadcast %cst_5 : f32 to vector<1x16xf32>
    %9 = arith.addf %7, %8 : vector<1x16xf32>
    %10 = math.rsqrt %9 : vector<1x16xf32>
    %c0_6 = arith.constant 0 : index
    %c0_7 = arith.constant 0 : index
    %11 = vector.load %arg3[%c0_6, %c0_7] : memref<10x2xf32, #tpu.memory_space<vmem>>, vector<10x2xf32>
    %12 = vector.extract_strided_slice %11 {offsets = [0, 0], sizes = [10, 1], strides = [1, 1]} : vector<10x2xf32> to vector<10x1xf32>
    %13 = vector.extract_strided_slice %11 {offsets = [0, 1], sizes = [10, 1], strides = [1, 1]} : vector<10x2xf32> to vector<10x1xf32>
    %14 = vector.broadcast %10 : vector<1x16xf32> to vector<10x16xf32>
    %15 = arith.mulf %2, %14 : vector<10x16xf32>
    %16 = vector.broadcast %12 : vector<10x1xf32> to vector<10x16xf32>
    %17 = arith.mulf %15, %16 : vector<10x16xf32>
    %18 = vector.broadcast %13 : vector<10x1xf32> to vector<10x16xf32>
    %19 = arith.addf %17, %18 : vector<10x16xf32>
    %c0_8 = arith.constant 0 : index
    %c0_9 = arith.constant 0 : index
    %20 = vector.load %arg4[%c0_8, %c0_9] : memref<10x16xf32, #tpu.memory_space<vmem>>, vector<10x16xf32>
    tpu.vector_store %arg4[%c0_8, %c0_9], %19 {strides = array<i32>} : memref<10x16xf32, #tpu.memory_space<vmem>>, vector<10x16xf32>,
    return
  }
  func.func @transform_0(%arg0: i32) -> (i32, i32) {
    %c0_i32 = arith.constant 0 : i32
    %c0_i32_0 = arith.constant 0 : i32
    return %c0_i32, %arg0 : i32, i32
  }
  func.func @transform_1(%arg0: i32) -> (i32, i32) {
    %c0_i32 = arith.constant 0 : i32
    %c0_i32_0 = arith.constant 0 : i32
    %c0_i32_1 = arith.constant 0 : i32
    return %c0_i32, %c0_i32_0 : i32, i32
  }
  func.func @transform_2(%arg0: i32) -> (i32, i32) {
    %c0_i32 = arith.constant 0 : i32
    %c0_i32_0 = arith.constant 0 : i32
    %c0_i32_1 = arith.constant 0 : i32
    return %c0_i32, %c0_i32_0 : i32, i32
  }
  func.func @transform_3(%arg0: i32) -> (i32, i32) {
    %c0_i32 = arith.constant 0 : i32
    %c0_i32_0 = arith.constant 0 : i32
    return %c0_i32, %arg0 : i32, i32
  }
}

</mosaic_0001>

<llo_original>
// kernel: tpu_custom_call.1
$region0: #{tpu_custom_call.1}
  #allocation0 [shape = 'u32[]', space=smem, size = 0x4, offset = 0x4, fixed_abs, tag = 'smem constant byte address 0x4 - core index']
  #allocation1 [shape = 'u32[72,128]{1,0:T(1,128)}', space=vmem, size = 0x9000, scoped, tag = 'internal scratch']
  %s0 = inlined_call_operand.vmem [shape: f32[100,16], index: 0, kind: input, shape index: {}]
  %s1 = inlined_call_operand.vmem [shape: f32[10,100], index: 1, kind: input, shape index: {}]
  %s2 = inlined_call_operand.vmem [shape: f32[10,2], index: 2, kind: input, shape index: {}]
  %s3 = inlined_call_operand.hbm [shape: f32[10,16], index: 3, kind: output, shape index: {}]
  %s4 = sld [smem:[#allocation0]]
  $region22: #{tpu_custom_call.1} parent=0
    _
  %s6 = ssub.s32 1, %s4
  %s7 = scalar_select 0, %s6, %s4
  $region1: #{tpu_custom_call.1} parent=0
    #allocation2 [shape = 'u8[8192]{0}', space=vmem, size = 0x2000, scoped, tag = 'output window, operand 0, single buffered']
    #allocation3 [shape = 's32[1]{0}', space=sflag, size = 0x4, scoped, tag = 'scoped memory for tpu_custom_call.1']
    %8 = vsyncpa [#allocation3], 0
    // Predicated region
    $region2: #{tpu_custom_call.1} parent=1 // pred_check
      _
    $region3: #{tpu_custom_call.1} parent=1 // pred_check_branch
      %10 = sbr.rel (0) target = $region5
    $region4: #{tpu_custom_call.1} parent=1 // pred_region
      _
    $region5: #{tpu_custom_call.1} parent=1 // pred_fallthru
      _
    // Predicated region
    $region6: #{tpu_custom_call.1} parent=1 // pred_check
      _
    $region7: #{tpu_custom_call.1} parent=1 // pred_check_branch
      %12 = sbr.rel (0) target = $region9
    $region8: #{tpu_custom_call.1} parent=1 // pred_region
      _
    $region9: #{tpu_custom_call.1} parent=1 // pred_fallthru
      _
    // Predicated region
    $region10: #{tpu_custom_call.1} parent=1 // pred_check
      _
    $region11: #{tpu_custom_call.1} parent=1 // pred_check_branch
      %14 = sbr.rel (0) target = $region13
    $region12: #{tpu_custom_call.1} parent=1 // pred_region
      _
    $region13: #{tpu_custom_call.1} parent=1 // pred_fallthru
      _
    %v15 = vld [vmem:[%s0] sm:$0xff]
    %v16 = vld [vmem:[%s0 + $0x8] sm:$0xff]
    %v17 = vld [vmem:[%s0 + $0x10] sm:$0xff]
    %v18 = vld [vmem:[%s0 + $0x18] sm:$0xff]
    %v19 = vld [vmem:[%s0 + $0x20] sm:$0xff]
    %v20 = vld [vmem:[%s0 + $0x28] sm:$0xff]
    %v21 = vld [vmem:[%s0 + $0x30] sm:$0xff]
    %v22 = vld [vmem:[%s0 + $0x38] sm:$0xff]
    %v23 = vld [vmem:[%s0 + $0x40] sm:$0xff]
    %v24 = vld [vmem:[%s0 + $0x48] sm:$0xff]
    %v25 = vld [vmem:[%s0 + $0x50] sm:$0xff]
    %v26 = vld [vmem:[%s0 + $0x58] sm:$0xff]
    %v27 = vld [vmem:[%s0 + $0x60] sm:$0xf]
    %v28 = vld [vmem:[%s1] sm:$0xff]
    %v29 = vld [vmem:[%s1 + $0x8] sm:$0x3]
    %vm30 = vcmask 818176
    %v32 = vsel %vm30, %v28, 0
    %v35 = vsel %vm30, %v29, 0
    %vm37 = vcmask 1043456
    %v39 = vsel %vm37, %v27, 0
    %41 = vmatpush.msra.mxu0 0.0
    %42 = vmatpush.msra.mxu0 0.0
    %43 = vmatpush.msra.mxu0 0.0
    %44 = vmatpush.msra.mxu0 %v39
    %45 = vmatpush.msra.mxu0 %v26
    %46 = vmatpush.msra.mxu0 %v25
    %47 = vmatpush.msra.mxu0 %v24
    %48 = vmatpush.msra.mxu0 %v23
    %49 = vmatpush.msra.mxu0 %v22
    %50 = vmatpush.msra.mxu0 %v21
    %51 = vmatpush.msra.mxu0 %v20
    %52 = vmatpush.msra.mxu0 %v19
    %53 = vmatpush.msra.mxu0 %v18
    %54 = vmatpush.msra.mxu0 %v17
    %55 = vmatpush.msra.mxu0 %v16
    %56 = vmatpush.msra.mxu0 %v15
    %57 = vmatmul.f32.gmra.mxu0 %v32
    %v58 = vpop.f32.mrf.mxu0
    %v59 = vadd.f32 0.0, %v58
    %60 = vmatmul.f32.gmra.mxu0 %v35
    %v61 = vpop.f32.mrf.mxu0
    %v62 = vadd.f32 0.0, %v61
    %63 = vdwg.mxu0
    %v64 = vmul.f32 %v59, %v59
    %v65 = vmul.f32 %v62, %v62
    %vm66 = vcmask 130048
    %v67 = vsel %vm66, %v64, 0.0
    %vm68 = vcmask 123904
    %v69 = vsel %vm68, %v65, 0.0
    %v70 = vadd.f32 %v67, %v69
    %v71 = vrot.slane %v70, 4
    %v72 = vadd.f32 %v70, %v71
    %v73 = vrot.slane %v72, 2
    %v74 = vadd.f32 %v72, %v73
    %v75 = vrot.slane %v74, 1
    %v76 = vadd.f32 %v74, %v75
    %v77 = vmul.f32 %v76, 0.1
    %v78 = vadd.f32 %v77, 1e-05
    %v79 = vrsqrt.pop %v78
    %v80 = vmul.f32 %v79, %v78
    %v81 = vmul.f32 %v80, %v79
    %v82 = vmul.f32 0.5, %v81
    %v83 = vsub.f32 1.5, %v82
    %v84 = vmul.f32 %v79, %v83
    %vm85 = vweird.f32 %v78
    %vm86 = vweird.f32 %v79
    %vm87 = vmor %vm85, %vm86
    %v88 = vsel %vm87, %v79, %v84
    %v89 = vld [vmem:[%s2] sm:$0xff]
    %v90 = vld [vmem:[%s2 + $0x8] sm:$0x3]
    %v91 = vmul.f32 %v59, %v88
    %v92 = vmul.f32 %v62, %v88
    %94 = vset.pattern.permute.xlu0 0
    %95 = vperm.xlu0 %94, %v89
    %v96 = vpop.permute.xlu0 %95
    %99 = vset.pattern.permute.xlu0 0
    %100 = vperm.xlu0 %99, %v90
    %v101 = vpop.permute.xlu0 %100
    %v103 = vmul.f32 %v91, %v96
    %v104 = vmul.f32 %v92, %v101
    %105 = vset.pattern.permute.xlu0 1
    %106 = vperm.xlu0 %105, %v89
    %v107 = vpop.permute.xlu0 %106
    %109 = vset.pattern.permute.xlu0 1
    %110 = vperm.xlu0 %109, %v90
    %v111 = vpop.permute.xlu0 %110
    %v113 = vadd.f32 %v103, %v107
    %v114 = vadd.f32 %v104, %v111
    %115 = vst.msk [vmem:[#allocation2] sm:$0xff] %vm66, %v113
    %116 = vst.msk [vmem:[#allocation2 + $0x8] sm:$0x3] %vm68, %v114
    // Predicated region
    $region14: #{tpu_custom_call.1} parent=1 // pred_check
      _
    $region15: #{tpu_custom_call.1} parent=1 // pred_check_branch
      %118 = sbr.rel (0) target = $region17
    $region16: #{tpu_custom_call.1} parent=1 // pred_region
      %120 = vsyncadd [#allocation3], 0
      %s121 = sshll.u32 [#allocation2], 4
      %s122 = int_to_ptr.vmem [resolvable:$true] %s121
      %s123 = sshll.u32 %s3, 4
      %s124 = int_to_ptr.hbm [resolvable:$true] %s123
      %129 = dma.vmem_to_hbm [thread:$0]  %s122, 256, %s124, [#allocation3], 128, 128, 8
    $region17: #{tpu_custom_call.1} parent=1 // pred_fallthru
      _
    // Predicated region
    $region18: #{tpu_custom_call.1} parent=1 // pred_check
      _
    $region19: #{tpu_custom_call.1} parent=1 // pred_check_branch
      %131 = sbr.rel (0) target = $region21
    $region20: #{tpu_custom_call.1} parent=1 // pred_region
      %133 = dma.done [#allocation3], 256
    $region21: #{tpu_custom_call.1} parent=1 // pred_fallthru
      _
    %134 = vsyncpa [#allocation3], 1

</llo_original>
